<compile_context>
chip_gen: v6e
topology: v6e:2x2x1
jax: 0.10.0
libtpu: 0.0.40
codegen_flags: <defaults>
</compile_context>

<pallas_src>
import functools

import jax
import jax.numpy as jnp
import numpy as np
from jax import lax
from jax.experimental import pallas as pl
from jax.experimental.pallas import tpu as pltpu


def _rs_gcn_kernel(c_inter, bblk,
                   x_ref, m2_ref, w3_ref, wf_ref, bd_ref, b_ref,
                   out_ref):
    f32 = jnp.float32
    C = c_inter

    w3 = w3_ref[...]                  # (3C, D)  fused g/theta/phi projection
    wf = wf_ref[...]                  # (D, C)   W with inference-mode BN folded in
    bd = bd_ref[...]                  # (C, C)   block-diagonal head mask
    b_all = b_ref[...]                # (3C + D, 1) packed biases
    b3 = b_all[0:3 * C, :]            # (3C, 1)
    b_w = b_all[3 * C:, :]            # (D, 1)   (BatchNorm already folded in)

    def body(b, carry):
        x = x_ref[b]                  # (D, Np)
        m2 = m2_ref[b]                # (2, Np)
        m = m2[0:1, :]                # (1, Np)  mask
        m_inv = m2[1:2, :]            # (1, Np)  mask * 1/max(sum(mask), 1)

        # Single fused projection for g / theta / phi: one MXU push, K = D.
        gtp = jnp.dot(w3, x, preferred_element_type=f32) + b3     # (3C, Np)
        g = gtp[0:C, :] * m_inv       # carries m_j / sum_m
        th = gtp[C:2 * C, :] * m      # carries m_i
        ph = gtp[2 * C:3 * C, :] * m  # carries m_j

        # Reassociated attention: S[c, d] = sum_j g[c, j] * phi[d, j]  (C, C),
        # contraction over Np.  Zeroing the off-diagonal head blocks makes this
        # exactly the per-head y_h = (R_h^T g_h) without materializing (Np, Np) R.
        s = lax.dot_general(g, ph, (((1,), (1,)), ((), ())),
                            preferred_element_type=f32)           # (C, C), K = Np
        s = s * bd
        # Pre-fold the (BN-folded) W projection into S, then one (D, Np) matmul.
        t = jnp.dot(wf, s, preferred_element_type=f32)             # (D, C),  K = C
        wy = jnp.dot(t, th, preferred_element_type=f32)            # (D, Np), K = C

        out_ref[b] = (wy + b_w) * m + x
        return carry

    lax.fori_loop(0, bblk, body, None, unroll=True)


def rs_gcn_forward(v, mask, params, num_head, block_batch=None):
    B, D, N = v.shape
    C = params["w_g"].shape[0]
    assert C % num_head == 0, "inter_channels must be divisible by num_head"
    dh = C // num_head

    # Lane-dense padding: pad N up to a multiple of 128 (mask zeros the tail).
    Np = max(128, ((N + 127) // 128) * 128)

    # Batch blocking: amortize grid-step overhead while keeping >= 2 grid steps
    # (so both TensorCores stay fed on megacore / v7x).
    if block_batch is None:
        block_batch = 8 if B >= 16 else 1
    nb = -(-B // block_batch)
    Bp = nb * block_batch

    v_p = v
    mask_p = mask.astype(jnp.float32)
    if Np != N or Bp != B:
        v_p = jnp.pad(v, ((0, Bp - B), (0, 0), (0, Np - N)))
        mask_p = jnp.pad(mask_p, ((0, Bp - B), (0, Np - N)))

    # Precompute mask and mask/sum(mask) on the host side (removes an in-kernel
    # cross-lane XLU reduce + divide per grid step).  max(.,1) guards all-zero rows.
    sum_m = jnp.maximum(jnp.sum(mask_p, axis=1, keepdims=True), 1.0)     # (Bp, 1)
    mask2 = jnp.stack([mask_p, mask_p / sum_m], axis=1)                  # (Bp, 2, Np)

    # Fuse the g / theta / phi 1x1-conv weights into one (3C, D) matrix.
    w3 = jnp.concatenate([params["w_g"], params["w_theta"], params["w_phi"]], axis=0)
    b3 = jnp.concatenate([params["b_g"], params["b_theta"], params["b_phi"]], axis=0)

    # Fold inference-mode BatchNorm into the W projection.
    eps = jnp.float32(1e-5)
    s = params["bn_gamma"] * lax.rsqrt(params["bn_var"] + eps)           # (D, 1)
    w_f = params["w_w"] * s                                              # (D, C)
    b_wf = s * (params["b_w"] - params["bn_mean"]) + params["bn_beta"]   # (D, 1)
    bias_all = jnp.concatenate([b3, b_wf], axis=0)                       # (3C + D, 1)

    # Static block-diagonal head mask: keep S[c, d] only where head(c) == head(d).
    hid = jnp.arange(C) // dh
    bd = (hid[:, None] == hid[None, :]).astype(jnp.float32)              # (C, C)

    kernel = functools.partial(_rs_gcn_kernel, C, block_batch)
    out = pl.pallas_call(
        kernel,
        out_shape=jax.ShapeDtypeStruct((Bp, D, Np), jnp.float32),
        grid_spec=pltpu.PrefetchScalarGridSpec(
            num_scalar_prefetch=0,
            grid=(nb,),
            in_specs=[
                pl.BlockSpec((block_batch, D, Np), lambda i: (i, 0, 0)),   # x slab
                pl.BlockSpec((block_batch, 2, Np), lambda i: (i, 0, 0)),   # [mask, mask/sum]
                pl.BlockSpec((3 * C, D), lambda i: (0, 0)),                # fused g/theta/phi W
                pl.BlockSpec((D, C), lambda i: (0, 0)),                    # BN-folded W
                pl.BlockSpec((C, C), lambda i: (0, 0)),                    # block-diag head mask
                pl.BlockSpec((3 * C + D, 1), lambda i: (0, 0)),            # packed biases
            ],
            out_specs=pl.BlockSpec((block_batch, D, Np), lambda i: (i, 0, 0)),
        ),
        compiler_params=pltpu.CompilerParams(
            # Batch blocks are fully independent -> shard across TensorCores.
            dimension_semantics=("parallel",)),
    )(v_p, mask2, w3, w_f, bd, bias_all)
    return out[:B, :, :N]


def rs_gcn_reference(v, mask, params, num_head):
    """Pure-JAX replica of the PyTorch forward for verification."""
    B, D, N = v.shape
    C = params["w_g"].shape[0]
    dh = C // num_head

    def conv(w, b, x):  # w: (Co, Ci), b: (Co, 1), x: (B, Ci, N)
        return jnp.einsum("oc,bcn->bon", w, x) + b[None, :, :]

    g_v = jnp.transpose(conv(params["w_g"], params["b_g"], v), (0, 2, 1))          # (B,N,C)
    g_v = g_v * mask[:, :, None]
    theta = jnp.transpose(conv(params["w_theta"], params["b_theta"], v), (0, 2, 1))
    phi = conv(params["w_phi"], params["b_phi"], v)                                # (B,C,N)

    theta = theta.reshape(B, N, num_head, dh).transpose(0, 2, 1, 3)                # (B,H,N,dh)
    phi = jnp.transpose(phi, (0, 2, 1)).reshape(B, N, num_head, dh)
    phi = phi.transpose(0, 2, 1, 3).transpose(0, 1, 3, 2)                          # (B,H,dh,N)
    R = jnp.einsum("bhik,bhkj->bhij", theta, phi)                                  # (B,H,N,N)
    sum_m = jnp.sum(mask, axis=1, keepdims=True)                                   # (B,1)
    R = R / sum_m[:, None, :, None]
    R = R * mask[:, None, :, None]
    R = R * mask[:, None, None, :]
    g_v = g_v.reshape(B, N, num_head, dh).transpose(0, 2, 1, 3)                    # (B,H,N,dh)
    y = jnp.einsum("bhij,bhjd->bhid", R, g_v)                                      # (B,H,N,dh)
    y = y.transpose(0, 2, 1, 3).reshape(B, N, C).transpose(0, 2, 1)                # (B,C,N)
    wy = conv(params["w_w"], params["b_w"], y)                                     # (B,D,N)
    eps = 1e-5
    wy = ((wy - params["bn_mean"][None, :, :])
          / jnp.sqrt(params["bn_var"][None, :, :] + eps)
          * params["bn_gamma"][None, :, :] + params["bn_beta"][None, :, :])
    wy = wy * mask[:, None, :]
    return wy + v


if __name__ == "__main__":
    B, D, C, H, N = 2, 32, 16, 4, 64   # in_channels=32, inter_channels=16, num_head=4, seq=64

    key = jax.random.PRNGKey(0)
    keys = jax.random.split(key, 16)

    def rand(k, shape, scale=0.1):
        return (scale * jax.random.normal(k, shape)).astype(jnp.float32)

    params = {
        "w_g": rand(keys[0], (C, D)),     "b_g": rand(keys[1], (C, 1)),
        "w_theta": rand(keys[2], (C, D)), "b_theta": rand(keys[3], (C, 1)),
        "w_phi": rand(keys[4], (C, D)),   "b_phi": rand(keys[5], (C, 1)),
        "w_w": rand(keys[6], (D, C)),     "b_w": rand(keys[7], (D, 1)),
        # Original module init sets BN weight/bias to 0 (=> W_y == 0); use
        # deterministic non-zero values here so the full path is exercised.
        "bn_gamma": rand(keys[8], (D, 1), 1.0),
        "bn_beta": rand(keys[9], (D, 1)),
        "bn_mean": rand(keys[10], (D, 1)),
        "bn_var": (jnp.abs(rand(keys[11], (D, 1), 1.0)) + 1.0).astype(jnp.float32),
    }

    v = jax.random.normal(keys[12], (B, D, N), dtype=jnp.float32)
    # Binary padding mask: batch 0 has 48 valid positions, batch 1 has 64.
    lengths = jnp.array([48, 64])
    mask = (jnp.arange(N)[None, :] < lengths[:, None]).astype(jnp.float32)  # (B, N)

    out = rs_gcn_forward(v, mask, params, H)
    out = jax.block_until_ready(out)

    ref = rs_gcn_reference(v, mask, params, H)
    np.testing.assert_allclose(np.asarray(out), np.asarray(ref), rtol=2e-3, atol=2e-3)

    print("KERNEL_OK")
</pallas_src>

<mosaic_0001>
module attributes {stable_mosaic.version = 11 : i64} {
  func.func @_rs_gcn_kernel(%arg0: i32, %arg1: memref<1x32x128xf32, #tpu.memory_space<vmem>>, %arg2: memref<1x2x128xf32, #tpu.memory_space<vmem>>, %arg3: memref<48x32xf32, #tpu.memory_space<vmem>>, %arg4: memref<32x16xf32, #tpu.memory_space<vmem>>, %arg5: memref<16x16xf32, #tpu.memory_space<vmem>>, %arg6: memref<80x1xf32, #tpu.memory_space<vmem>>, %arg7: memref<1x32x128xf32, #tpu.memory_space<vmem>>) attributes {dimension_semantics = [#tpu.dimension_semantics<parallel>], iteration_bounds = array<i64: 2>, scalar_prefetch = 0 : i64, scratch_operands = 0 : i64, tpu.core_type = #tpu.core_type<tc>, window_params = [{transform_indices = @transform_0, window_bounds = array<i64: 1, 32, 128>}, {transform_indices = @transform_1, window_bounds = array<i64: 1, 2, 128>}, {pipeline_mode = #tpu.pipeline_mode<synchronous>, transform_indices = @transform_2, window_bounds = array<i64: 48, 32>}, {pipeline_mode = #tpu.pipeline_mode<synchronous>, transform_indices = @transform_3, window_bounds = array<i64: 32, 16>}, {pipeline_mode = #tpu.pipeline_mode<synchronous>, transform_indices = @transform_4, window_bounds = array<i64: 16, 16>}, {pipeline_mode = #tpu.pipeline_mode<synchronous>, transform_indices = @transform_5, window_bounds = array<i64: 80, 1>}, {transform_indices = @transform_6, window_bounds = array<i64: 1, 32, 128>}]} {
    %c0 = arith.constant 0 : index
    %c0_0 = arith.constant 0 : index
    %0 = vector.load %arg3[%c0, %c0_0] : memref<48x32xf32, #tpu.memory_space<vmem>>, vector<48x32xf32>
    %c0_1 = arith.constant 0 : index
    %c0_2 = arith.constant 0 : index
    %1 = vector.load %arg4[%c0_1, %c0_2] : memref<32x16xf32, #tpu.memory_space<vmem>>, vector<32x16xf32>
    %c0_3 = arith.constant 0 : index
    %c0_4 = arith.constant 0 : index
    %2 = vector.load %arg5[%c0_3, %c0_4] : memref<16x16xf32, #tpu.memory_space<vmem>>, vector<16x16xf32>
    %c0_5 = arith.constant 0 : index
    %c0_6 = arith.constant 0 : index
    %3 = vector.load %arg6[%c0_5, %c0_6] : memref<80x1xf32, #tpu.memory_space<vmem>>, vector<80x1xf32>
    %4 = vector.extract_strided_slice %3 {offsets = [0, 0], sizes = [48, 1], strides = [1, 1]} : vector<80x1xf32> to vector<48x1xf32>
    %5 = vector.extract_strided_slice %3 {offsets = [48, 0], sizes = [32, 1], strides = [1, 1]} : vector<80x1xf32> to vector<32x1xf32>
    %c0_i32 = arith.constant 0 : i32
    %6 = arith.index_cast %c0_i32 : i32 to index
    %c0_7 = arith.constant 0 : index
    %c0_8 = arith.constant 0 : index
    %7 = vector.load %arg1[%6, %c0_7, %c0_8] : memref<1x32x128xf32, #tpu.memory_space<vmem>>, vector<1x32x128xf32>
    %8 = vector.shape_cast %7 : vector<1x32x128xf32> to vector<32x128xf32>
    %9 = arith.index_cast %c0_i32 : i32 to index
    %c0_9 = arith.constant 0 : index
    %c0_10 = arith.constant 0 : index
    %10 = vector.load %arg2[%9, %c0_9, %c0_10] : memref<1x2x128xf32, #tpu.memory_space<vmem>>, vector<1x2x128xf32>
    %11 = vector.shape_cast %10 : vector<1x2x128xf32> to vector<2x128xf32>
    %12 = vector.extract_strided_slice %11 {offsets = [0, 0], sizes = [1, 128], strides = [1, 1]} : vector<2x128xf32> to vector<1x128xf32>
    %13 = vector.extract_strided_slice %11 {offsets = [1, 0], sizes = [1, 128], strides = [1, 1]} : vector<2x128xf32> to vector<1x128xf32>
    %cst = arith.constant dense<0.000000e+00> : vector<48x128xf32>
    %14 = tpu.matmul %0, %8, %cst {dimension_numbers = #tpu.dot_dimension_numbers<[1], [0], [0], [1], [0, 0, 1, 1], [], []>} : vector<48x32xf32>, vector<32x128xf32>, vector<48x128xf32> -> vector<48x128xf32>
    %15 = vector.broadcast %4 : vector<48x1xf32> to vector<48x128xf32>
    %16 = arith.addf %14, %15 : vector<48x128xf32>
    %17 = vector.extract_strided_slice %16 {offsets = [0, 0], sizes = [16, 128], strides = [1, 1]} : vector<48x128xf32> to vector<16x128xf32>
    %18 = vector.broadcast %13 : vector<1x128xf32> to vector<16x128xf32>
    %19 = arith.mulf %17, %18 : vector<16x128xf32>
    %20 = vector.extract_strided_slice %16 {offsets = [16, 0], sizes = [16, 128], strides = [1, 1]} : vector<48x128xf32> to vector<16x128xf32>
    %21 = vector.broadcast %12 : vector<1x128xf32> to vector<16x128xf32>
    %22 = arith.mulf %20, %21 : vector<16x128xf32>
    %23 = vector.extract_strided_slice %16 {offsets = [32, 0], sizes = [16, 128], strides = [1, 1]} : vector<48x128xf32> to vector<16x128xf32>
    %24 = vector.broadcast %12 : vector<1x128xf32> to vector<16x128xf32>
    %25 = arith.mulf %23, %24 : vector<16x128xf32>
    %cst_11 = arith.constant dense<0.000000e+00> : vector<16x16xf32>
    %26 = tpu.matmul %19, %25, %cst_11 {dimension_numbers = #tpu.dot_dimension_numbers<[1], [1], [0], [0], [0, 0, 1, 0], [], []>} : vector<16x128xf32>, vector<16x128xf32>, vector<16x16xf32> -> vector<16x16xf32>
    %27 = arith.mulf %26, %2 : vector<16x16xf32>
    %cst_12 = arith.constant dense<0.000000e+00> : vector<32x16xf32>
    %28 = tpu.matmul %1, %27, %cst_12 {dimension_numbers = #tpu.dot_dimension_numbers<[1], [0], [0], [1], [0, 0, 1, 1], [], []>} : vector<32x16xf32>, vector<16x16xf32>, vector<32x16xf32> -> vector<32x16xf32>
    %cst_13 = arith.constant dense<0.000000e+00> : vector<32x128xf32>
    %29 = tpu.matmul %28, %22, %cst_13 {dimension_numbers = #tpu.dot_dimension_numbers<[1], [0], [0], [1], [0, 0, 1, 1], [], []>} : vector<32x16xf32>, vector<16x128xf32>, vector<32x128xf32> -> vector<32x128xf32>
    %30 = vector.broadcast %5 : vector<32x1xf32> to vector<32x128xf32>
    %31 = arith.addf %29, %30 : vector<32x128xf32>
    %32 = vector.broadcast %12 : vector<1x128xf32> to vector<32x128xf32>
    %33 = arith.mulf %31, %32 : vector<32x128xf32>
    %34 = arith.addf %33, %8 : vector<32x128xf32>
    %35 = arith.index_cast %c0_i32 : i32 to index
    %c0_14 = arith.constant 0 : index
    %c0_15 = arith.constant 0 : index
    %36 = vector.load %arg7[%35, %c0_14, %c0_15] : memref<1x32x128xf32, #tpu.memory_space<vmem>>, vector<1x32x128xf32>
    %37 = vector.shape_cast %36 : vector<1x32x128xf32> to vector<32x128xf32>
    %38 = vector.shape_cast %34 : vector<32x128xf32> to vector<1x32x128xf32>
    tpu.vector_store %arg7[%35, %c0_14, %c0_15], %38 {strides = array<i32>} : memref<1x32x128xf32, #tpu.memory_space<vmem>>, vector<1x32x128xf32>,
    %c1_i32 = arith.constant 1 : i32
    return
  }
  func.func @transform_0(%arg0: i32) -> (i32, i32, i32) {
    %c0_i32 = arith.constant 0 : i32
    %c0_i32_0 = arith.constant 0 : i32
    %c0_i32_1 = arith.constant 0 : i32
    return %arg0, %c0_i32, %c0_i32_0 : i32, i32, i32
  }
  func.func @transform_1(%arg0: i32) -> (i32, i32, i32) {
    %c0_i32 = arith.constant 0 : i32
    %c0_i32_0 = arith.constant 0 : i32
    %c0_i32_1 = arith.constant 0 : i32
    return %arg0, %c0_i32, %c0_i32_0 : i32, i32, i32
  }
  func.func @transform_2(%arg0: i32) -> (i32, i32) {
    %c0_i32 = arith.constant 0 : i32
    %c0_i32_0 = arith.constant 0 : i32
    %c0_i32_1 = arith.constant 0 : i32
    return %c0_i32, %c0_i32_0 : i32, i32
  }
  func.func @transform_3(%arg0: i32) -> (i32, i32) {
    %c0_i32 = arith.constant 0 : i32
    %c0_i32_0 = arith.constant 0 : i32
    %c0_i32_1 = arith.constant 0 : i32
    return %c0_i32, %c0_i32_0 : i32, i32
  }
  func.func @transform_4(%arg0: i32) -> (i32, i32) {
    %c0_i32 = arith.constant 0 : i32
    %c0_i32_0 = arith.constant 0 : i32
    %c0_i32_1 = arith.constant 0 : i32
    return %c0_i32, %c0_i32_0 : i32, i32
  }
  func.func @transform_5(%arg0: i32) -> (i32, i32) {
    %c0_i32 = arith.constant 0 : i32
    %c0_i32_0 = arith.constant 0 : i32
    %c0_i32_1 = arith.constant 0 : i32
    return %c0_i32, %c0_i32_0 : i32, i32
  }
  func.func @transform_6(%arg0: i32) -> (i32, i32, i32) {
    %c0_i32 = arith.constant 0 : i32
    %c0_i32_0 = arith.constant 0 : i32
    %c0_i32_1 = arith.constant 0 : i32
    return %arg0, %c0_i32, %c0_i32_0 : i32, i32, i32
  }
}

</mosaic_0001>

<llo_original>
// kernel: tpu_custom_call.1
$region0: #{tpu_custom_call.1}
  #allocation0 [shape = 'u32[]', space=smem, size = 0x4, offset = 0x4, fixed_abs, tag = 'smem constant byte address 0x4 - core index']
  #allocation1 [shape = 'u32[144,128]{1,0:T(1,128)}', space=vmem, size = 0x12000, scoped, tag = 'internal scratch']
  %s0 = inlined_call_operand.vmem [shape: f32[2,32,128], index: 0, kind: input, shape index: {}]
  %s1 = inlined_call_operand.vmem [shape: f32[2,2,128], index: 1, kind: input, shape index: {}]
  %s2 = inlined_call_operand.vmem [shape: f32[48,32], index: 2, kind: input, shape index: {}]
  %s3 = inlined_call_operand.vmem [shape: f32[32,16], index: 3, kind: input, shape index: {}]
  %s4 = inlined_call_operand.vmem [shape: f32[16,16], index: 4, kind: input, shape index: {}]
  %s5 = inlined_call_operand.vmem [shape: f32[80,1], index: 5, kind: input, shape index: {}]
  %s6 = inlined_call_operand.hbm [shape: f32[2,32,128], index: 6, kind: output, shape index: {}]
  %s7 = sld [smem:[#allocation0]]
  $region57: #{tpu_custom_call.1} parent=0
    _
  %s9 = ssub.s32 1, %s7
  %s10 = scalar_select 0, %s9, %s7
  $region1: #{tpu_custom_call.1} parent=0
    #allocation2 [shape = 'u8[32768]{0}', space=vmem, size = 0x8000, scoped, tag = 'output window, operand 0']
    #allocation3 [shape = 's32[2]{0}', space=sflag, size = 0x8, scoped, tag = 'scoped memory for tpu_custom_call.1']
    %11 = vsyncpa [#allocation3], 0
    %s12 = scalar_lea.sflag [#allocation3], 1
    %13 = vsyncpa %s12, 0
    loop: start=0, step=1, limit=4
    $region2: #{tpu_custom_call.1} parent=1 // loop_pre_header
      _
    $region3: #{tpu_custom_call.1} parent=1 // loop_header
      %s15 = sphi 0, %s19
      %p16 = scmp.ge.s32.totalorder %s15, 4
      %s25 = sphi 0, %s27
      %s28 = sphi 0, %s25
      %s29 = sphi 0, %s28
      %s45 = sphi 0, %s29
      %s51 = sphi 0, %s53
      %s54 = sphi 0, %s51
      %s55 = sphi 0, %s54
      %s71 = sphi 0, %s55
      %s75 = sphi 0, %s75
      %s77 = sphi 0, %s75
      %s78 = sphi 0, %s77
      %s92 = sphi 0, %s78
      %s96 = sphi 0, %s96
      %s98 = sphi 0, %s96
      %s99 = sphi 0, %s98
      %s113 = sphi 0, %s99
      %s117 = sphi 0, %s117
      %s119 = sphi 0, %s117
      %s120 = sphi 0, %s119
      %s134 = sphi 0, %s120
      %s138 = sphi 0, %s138
      %s140 = sphi 0, %s138
      %s141 = sphi 0, %s140
      %s155 = sphi 0, %s141
      %s161 = sphi 0, %s163
      %s164 = sphi 0, %s161
      %s165 = sphi 0, %s164
      %s181 = sphi 0, %s165
    $region4: #{tpu_custom_call.1} parent=1 // loop_header_branch
      %18 = sbr.rel (%p16) target = $region8
    $region5: #{tpu_custom_call.1} parent=1 // loop_body
      %s20 = ssub.s32 %s15, 1
      %s21 = ssub.s32 %s15, 2
      %s22 = sadd.s32 %s15, 1
      %s23 = ssub.s32 %s15, %s22
      %p24 = scmp.eq.s32.totalorder %s23, 0
      %s26 = sadd.s32 %s25, 1
      %s27 = scalar_select %p24, %s25, %s26
      %p30 = pneg %p24
      %p31 = scmp.eq.s32.totalorder %s15, 1
      %p32 = por %p30, %p31
      %p33 = scmp.ne.s32.totalorder %s25, %s28
      %p34 = scmp.eq.s32.totalorder %s15, 0
      %p35 = por %p33, %p34
      %p36 = scmp.ne.s32.totalorder %s25, %s28
      %p37 = scmp.eq.s32.totalorder %s20, 1
      %p38 = por %p36, %p37
      %p39 = scmp.ne.s32.totalorder %s28, %s29
      %p40 = scmp.eq.s32.totalorder %s20, 0
      %p41 = por %p39, %p40
      %p42 = scmp.ne.s32.totalorder %s28, %s29
      %p43 = scmp.eq.s32.totalorder %s21, 1
      %p44 = por %p42, %p43
      %p46 = scmp.ne.s32.totalorder %s29, %s45
      %p47 = scmp.eq.s32.totalorder %s21, 0
      %p48 = por %p46, %p47
      %s49 = ssub.s32 %s15, %s22
      %p50 = scmp.eq.s32.totalorder %s49, 0
      %s52 = sadd.s32 %s51, 1
      %s53 = scalar_select %p50, %s51, %s52
      %p56 = pneg %p50
      %p57 = scmp.eq.s32.totalorder %s15, 1
      %p58 = por %p56, %p57
      %p59 = scmp.ne.s32.totalorder %s51, %s54
      %p60 = scmp.eq.s32.totalorder %s15, 0
      %p61 = por %p59, %p60
      %p62 = scmp.ne.s32.totalorder %s51, %s54
      %p63 = scmp.eq.s32.totalorder %s20, 1
      %p64 = por %p62, %p63
      %p65 = scmp.ne.s32.totalorder %s54, %s55
      %p66 = scmp.eq.s32.totalorder %s20, 0
      %p67 = por %p65, %p66
      %p68 = scmp.ne.s32.totalorder %s54, %s55
      %p69 = scmp.eq.s32.totalorder %s21, 1
      %p70 = por %p68, %p69
      %p72 = scmp.ne.s32.totalorder %s55, %s71
      %p73 = scmp.eq.s32.totalorder %s21, 0
      %p74 = por %p72, %p73
      %s76 = sadd.s32 %s75, 1
      %p79 = scmp.eq.s32.totalorder %s15, 1
      %p80 = scmp.ne.s32.totalorder %s75, %s77
      %p81 = scmp.eq.s32.totalorder %s15, 0
      %p82 = por %p80, %p81
      %p83 = scmp.ne.s32.totalorder %s75, %s77
      %p84 = scmp.eq.s32.totalorder %s20, 1
      %p85 = por %p83, %p84
      %p86 = scmp.ne.s32.totalorder %s77, %s78
      %p87 = scmp.eq.s32.totalorder %s20, 0
      %p88 = por %p86, %p87
      %p89 = scmp.ne.s32.totalorder %s77, %s78
      %p90 = scmp.eq.s32.totalorder %s21, 1
      %p91 = por %p89, %p90
      %p93 = scmp.ne.s32.totalorder %s78, %s92
      %p94 = scmp.eq.s32.totalorder %s21, 0
      %p95 = por %p93, %p94
      %s97 = sadd.s32 %s96, 1
      %p100 = scmp.eq.s32.totalorder %s15, 1
      %p101 = scmp.ne.s32.totalorder %s96, %s98
      %p102 = scmp.eq.s32.totalorder %s15, 0
      %p103 = por %p101, %p102
      %p104 = scmp.ne.s32.totalorder %s96, %s98
      %p105 = scmp.eq.s32.totalorder %s20, 1
      %p106 = por %p104, %p105
      %p107 = scmp.ne.s32.totalorder %s98, %s99
      %p108 = scmp.eq.s32.totalorder %s20, 0
      %p109 = por %p107, %p108
      %p110 = scmp.ne.s32.totalorder %s98, %s99
      %p111 = scmp.eq.s32.totalorder %s21, 1
      %p112 = por %p110, %p111
      %p114 = scmp.ne.s32.totalorder %s99, %s113
      %p115 = scmp.eq.s32.totalorder %s21, 0
      %p116 = por %p114, %p115
      %s118 = sadd.s32 %s117, 1
      %p121 = scmp.eq.s32.totalorder %s15, 1
      %p122 = scmp.ne.s32.totalorder %s117, %s119
      %p123 = scmp.eq.s32.totalorder %s15, 0
      %p124 = por %p122, %p123
      %p125 = scmp.ne.s32.totalorder %s117, %s119
      %p126 = scmp.eq.s32.totalorder %s20, 1
      %p127 = por %p125, %p126
      %p128 = scmp.ne.s32.totalorder %s119, %s120
      %p129 = scmp.eq.s32.totalorder %s20, 0
      %p130 = por %p128, %p129
      %p131 = scmp.ne.s32.totalorder %s119, %s120
      %p132 = scmp.eq.s32.totalorder %s21, 1
      %p133 = por %p131, %p132
      %p135 = scmp.ne.s32.totalorder %s120, %s134
      %p136 = scmp.eq.s32.totalorder %s21, 0
      %p137 = por %p135, %p136
      %s139 = sadd.s32 %s138, 1
      %p142 = scmp.eq.s32.totalorder %s15, 1
      %p143 = scmp.ne.s32.totalorder %s138, %s140
      %p144 = scmp.eq.s32.totalorder %s15, 0
      %p145 = por %p143, %p144
      %p146 = scmp.ne.s32.totalorder %s138, %s140
      %p147 = scmp.eq.s32.totalorder %s20, 1
      %p148 = por %p146, %p147
      %p149 = scmp.ne.s32.totalorder %s140, %s141
      %p150 = scmp.eq.s32.totalorder %s20, 0
      %p151 = por %p149, %p150
      %p152 = scmp.ne.s32.totalorder %s140, %s141
      %p153 = scmp.eq.s32.totalorder %s21, 1
      %p154 = por %p152, %p153
      %p156 = scmp.ne.s32.totalorder %s141, %s155
      %p157 = scmp.eq.s32.totalorder %s21, 0
      %p158 = por %p156, %p157
      %s159 = ssub.s32 %s15, %s22
      %p160 = scmp.eq.s32.totalorder %s159, 0
      %s162 = sadd.s32 %s161, 1
      %s163 = scalar_select %p160, %s161, %s162
      %p166 = pneg %p160
      %p167 = scmp.eq.s32.totalorder %s15, 1
      %p168 = por %p166, %p167
      %p169 = scmp.ne.s32.totalorder %s161, %s164
      %p170 = scmp.eq.s32.totalorder %s15, 0
      %p171 = por %p169, %p170
      %p172 = scmp.ne.s32.totalorder %s161, %s164
      %p173 = scmp.eq.s32.totalorder %s20, 1
      %p174 = por %p172, %p173
      %p175 = scmp.ne.s32.totalorder %s164, %s165
      %p176 = scmp.eq.s32.totalorder %s20, 0
      %p177 = por %p175, %p176
      %p178 = scmp.ne.s32.totalorder %s164, %s165
      %p179 = scmp.eq.s32.totalorder %s21, 1
      %p180 = por %p178, %p179
      %p182 = scmp.ne.s32.totalorder %s165, %s181
      %p183 = scmp.eq.s32.totalorder %s21, 0
      %p184 = por %p182, %p183
      %p185 = scmp.le.s32.totalorder 1, %s15
      %p186 = scmp.lt.s32.totalorder %s15, 3
      %p187 = pnand %p185, %p186
      %p188 = pneg %p187
      // Predicated region
      $region9: #{tpu_custom_call.1} parent=5 // pred_check
        _
      $region10: #{tpu_custom_call.1} parent=5 // pred_check_branch
        %190 = sbr.rel (%p187) target = $region12
      $region11: #{tpu_custom_call.1} parent=5 // pred_region
        %s191 = ssub.s32 %s15, 1
        // Predicated region
        $region13: #{tpu_custom_call.1} parent=11 // pred_check
          %p192 = pneg %p88
        $region14: #{tpu_custom_call.1} parent=11 // pred_check_branch
          %194 = sbr.rel (%p192) target = $region16
        $region15: #{tpu_custom_call.1} parent=11 // pred_region
          _
        $region16: #{tpu_custom_call.1} parent=11 // pred_fallthru
          _
        // Predicated region
        $region17: #{tpu_custom_call.1} parent=11 // pred_check
          %p195 = pneg %p109
        $region18: #{tpu_custom_call.1} parent=11 // pred_check_branch
          %197 = sbr.rel (%p195) target = $region20
        $region19: #{tpu_custom_call.1} parent=11 // pred_region
          _
        $region20: #{tpu_custom_call.1} parent=11 // pred_fallthru
          _
        // Predicated region
        $region21: #{tpu_custom_call.1} parent=11 // pred_check
          %p198 = pneg %p130
        $region22: #{tpu_custom_call.1} parent=11 // pred_check_branch
          %200 = sbr.rel (%p198) target = $region24
        $region23: #{tpu_custom_call.1} parent=11 // pred_region
          _
        $region24: #{tpu_custom_call.1} parent=11 // pred_fallthru
          _
        // Predicated region
        $region25: #{tpu_custom_call.1} parent=11 // pred_check
          %p201 = pneg %p151
        $region26: #{tpu_custom_call.1} parent=11 // pred_check_branch
          %203 = sbr.rel (%p201) target = $region28
        $region27: #{tpu_custom_call.1} parent=11 // pred_region
          _
        $region28: #{tpu_custom_call.1} parent=11 // pred_fallthru
          _
      $region12: #{tpu_custom_call.1} parent=5 // pred_fallthru
        _
      %p204 = scmp.lt.s32.totalorder %s15, 2
      // Predicated region
      $region29: #{tpu_custom_call.1} parent=5 // pred_check
        %p205 = pneg %p204
      $region30: #{tpu_custom_call.1} parent=5 // pred_check_branch
        %207 = sbr.rel (%p205) target = $region32
      $region31: #{tpu_custom_call.1} parent=5 // pred_region
        // Predicated region
        $region33: #{tpu_custom_call.1} parent=31 // pred_check
          %p208 = pneg %p35
        $region34: #{tpu_custom_call.1} parent=31 // pred_check_branch
          %210 = sbr.rel (%p208) target = $region36
        $region35: #{tpu_custom_call.1} parent=31 // pred_region
          %p211 = scmp.lt.s32.totalorder %s15, 1
          %s212 = scalar_select %p211, %s15, 1
          %s213 = smul.addr %s212, 4
          %s214 = smul.addr %s213, 8
          %s215 = scalar_lea.vmem %s0, %s214
        $region36: #{tpu_custom_call.1} parent=31 // pred_fallthru
          _
        // Predicated region
        $region37: #{tpu_custom_call.1} parent=31 // pred_check
          %p216 = pneg %p61
        $region38: #{tpu_custom_call.1} parent=31 // pred_check_branch
          %218 = sbr.rel (%p216) target = $region40
        $region39: #{tpu_custom_call.1} parent=31 // pred_region
          %p219 = scmp.lt.s32.totalorder %s15, 1
          %s220 = scalar_select %p219, %s15, 1
          %s221 = smul.addr %s220, 2
          %s222 = scalar_lea.vmem %s1, %s221
        $region40: #{tpu_custom_call.1} parent=31 // pred_fallthru
          _
      $region32: #{tpu_custom_call.1} parent=5 // pred_fallthru
        _
      %p223 = scmp.le.s32.totalorder 1, %s15
      %p224 = scmp.lt.s32.totalorder %s15, 3
      %p225 = pnand %p223, %p224
      %p226 = pneg %p225
      // Predicated region
      $region41: #{tpu_custom_call.1} parent=5 // pred_check
        _
      $region42: #{tpu_custom_call.1} parent=5 // pred_check_branch
        %228 = sbr.rel (%p225) target = $region44
      $region43: #{tpu_custom_call.1} parent=5 // pred_region
        %s229 = ssub.s32 %s15, 1
        %p230 = scmp.lt.s32.totalorder %s20, 1
        %s231 = scalar_select %p230, %s20, 1
        %s232 = smul.addr %s231, 4
        %s233 = smul.addr %s232, 8
        %s234 = scalar_lea.vmem %s0, %s233
        %p235 = pneg %p41
        %p236 = pneg %p38
        %p237 = scmp.lt.s32.totalorder %s20, 1
        %s238 = scalar_select %p237, %s20, 1
        %s239 = smul.addr %s238, 2
        %s240 = scalar_lea.vmem %s1, %s239
        %p241 = pneg %p67
        %p242 = pneg %p64
        %p243 = pneg %p88
        %p244 = pneg %p85
        %p245 = pneg %p109
        %p246 = pneg %p106
        %p247 = pneg %p130
        %p248 = pneg %p127
        %p249 = pneg %p151
        %p250 = pneg %p148
        %p251 = pneg %p177
        %p252 = pneg %p174
        %s253 = sand.u32 %s164, 1
        %s254 = scalar_lea.sflag [#allocation3], %s253
        %s255 = sand.u32 %s164, 1
        %s256 = smul.addr %s255, 32
        %s257 = scalar_lea.vmem [#allocation2], %s256
        %p258 = scmp.lt.s32.totalorder %s20, 1
        %s259 = scalar_select %p258, %s20, 1
        %s260 = smul.addr %s259, 4
        %s261 = smul.addr %s260, 8
        %s262 = scalar_lea.vmem %s0, %s261
        %p263 = scmp.lt.s32.totalorder %s20, 1
        %s264 = scalar_select %p263, %s20, 1
        %s265 = smul.addr %s264, 2
        %s266 = scalar_lea.vmem %s1, %s265
        %v267 = vld [vmem:[%s2] sm:$0xff]
        %v268 = vld [vmem:[%s2 + $0x8] sm:$0xff]
        %v269 = vld [vmem:[%s2 + $0x10] sm:$0xff]
        %v270 = vld [vmem:[%s2 + $0x18] sm:$0xff]
        %v271 = vld [vmem:[%s2 + $0x20] sm:$0xff]
        %v272 = vld [vmem:[%s2 + $0x28] sm:$0xff]
        %v273 = vld [vmem:[%s3] sm:$0xff]
        %v274 = vld [vmem:[%s3 + $0x8] sm:$0xff]
        %v275 = vld [vmem:[%s3 + $0x10] sm:$0xff]
        %v276 = vld [vmem:[%s3 + $0x18] sm:$0xff]
        %v277 = vld [vmem:[%s4] sm:$0xff]
        %v278 = vld [vmem:[%s4 + $0x8] sm:$0xff]
        %v279 = vld [vmem:[%s5] sm:$0xff]
        %v280 = vld [vmem:[%s5 + $0x8] sm:$0xff]
        %v281 = vld [vmem:[%s5 + $0x10] sm:$0xff]
        %v282 = vld [vmem:[%s5 + $0x18] sm:$0xff]
        %v283 = vld [vmem:[%s5 + $0x20] sm:$0xff]
        %v284 = vld [vmem:[%s5 + $0x28] sm:$0xff]
        %v285 = vld [vmem:[%s5 + $0x30] sm:$0xff]
        %v286 = vld [vmem:[%s5 + $0x38] sm:$0xff]
        %v287 = vld [vmem:[%s5 + $0x40] sm:$0xff]
        %v288 = vld [vmem:[%s5 + $0x48] sm:$0xff]
        %v289 = vld [vmem:[%s262] sm:$0xff]
        %v290 = vld [vmem:[%s262 + $0x8] sm:$0xff]
        %v291 = vld [vmem:[%s262 + $0x10] sm:$0xff]
        %v292 = vld [vmem:[%s262 + $0x18] sm:$0xff]
        %v293 = vld [vmem:[%s266] sm:$0x3]
        %295 = vset.pattern.permute.xlu0 0
        %296 = vperm.xlu0 %295, %v279
        %v297 = vpop.permute.xlu0 %296
        %300 = vset.pattern.permute.xlu0 0
        %301 = vperm.xlu0 %300, %v280
        %v302 = vpop.permute.xlu0 %301
        %305 = vset.pattern.permute.xlu0 0
        %306 = vperm.xlu0 %305, %v281
        %v307 = vpop.permute.xlu0 %306
        %310 = vset.pattern.permute.xlu0 0
        %311 = vperm.xlu0 %310, %v282
        %v312 = vpop.permute.xlu0 %311
        %315 = vset.pattern.permute.xlu0 0
        %316 = vperm.xlu0 %315, %v283
        %v317 = vpop.permute.xlu0 %316
        %320 = vset.pattern.permute.xlu0 0
        %321 = vperm.xlu0 %320, %v284
        %v322 = vpop.permute.xlu0 %321
        %vm324 = vcmask 261120
        %v326 = vsel %vm324, %v267, 0
        %v329 = vsel %vm324, %v268, 0
        %v332 = vsel %vm324, %v269, 0
        %v335 = vsel %vm324, %v270, 0
        %v338 = vsel %vm324, %v271, 0
        %v341 = vsel %vm324, %v272, 0
        %343 = vmatprep.subr.mxu0 0.0
        %344 = vmatpush1.msra.mxu0 0.0
        %345 = vmatprep.subr.mxu0 0.0
        %346 = vmatpush1.msra.mxu0 0.0
        %347 = vmatprep.subr.mxu0 0.0
        %348 = vmatpush1.msra.mxu0 0.0
        %349 = vmatprep.subr.mxu0 0.0
        %350 = vmatpush1.msra.mxu0 0.0
        %351 = vmatprep.subr.mxu0 0.0
        %352 = vmatpush1.msra.mxu0 0.0
        %353 = vmatprep.subr.mxu0 0.0
        %354 = vmatpush1.msra.mxu0 0.0
        %355 = vmatprep.subr.mxu0 0.0
        %356 = vmatpush1.msra.mxu0 0.0
        %357 = vmatprep.subr.mxu0 0.0
        %358 = vmatpush1.msra.mxu0 0.0
        %359 = vmatprep.subr.mxu0 0.0
        %360 = vmatpush1.msra.mxu0 0.0
        %361 = vmatprep.subr.mxu0 0.0
        %362 = vmatpush1.msra.mxu0 0.0
        %363 = vmatprep.subr.mxu0 0.0
        %364 = vmatpush1.msra.mxu0 0.0
        %365 = vmatprep.subr.mxu0 0.0
        %366 = vmatpush1.msra.mxu0 0.0
        %367 = vmatprep.subr.mxu0 0.0
        %368 = vmatpush1.msra.mxu0 %v292
        %369 = vmatprep.subr.mxu0 0.0
        %370 = vmatpush1.msra.mxu0 %v291
        %371 = vmatprep.subr.mxu0 0.0
        %372 = vmatpush1.msra.mxu0 %v290
        %373 = vmatprep.subr.mxu0 0.0
        %374 = vmatpush1.msra.mxu0 %v289
        %375 = vmatprep.subr.mxu0 0.0
        %376 = vmatpush2.msra.mxu0 0.0
        %377 = vmatprep.subr.mxu0 0.0
        %378 = vmatpush2.msra.mxu0 0.0
        %379 = vmatprep.subr.mxu0 0.0
        %380 = vmatpush2.msra.mxu0 0.0
        %381 = vmatprep.subr.mxu0 0.0
        %382 = vmatpush2.msra.mxu0 0.0
        %383 = vmatprep.subr.mxu0 0.0
        %384 = vmatpush2.msra.mxu0 0.0
        %385 = vmatprep.subr.mxu0 0.0
        %386 = vmatpush2.msra.mxu0 0.0
        %387 = vmatprep.subr.mxu0 0.0
        %388 = vmatpush2.msra.mxu0 0.0
        %389 = vmatprep.subr.mxu0 0.0
        %390 = vmatpush2.msra.mxu0 0.0
        %391 = vmatprep.subr.mxu0 0.0
        %392 = vmatpush2.msra.mxu0 0.0
        %393 = vmatprep.subr.mxu0 0.0
        %394 = vmatpush2.msra.mxu0 0.0
        %395 = vmatprep.subr.mxu0 0.0
        %396 = vmatpush2.msra.mxu0 0.0
        %397 = vmatprep.subr.mxu0 0.0
        %398 = vmatpush2.msra.mxu0 0.0
        %399 = vmatprep.subr.mxu0 0.0
        %400 = vmatpush2.msra.mxu0 0.0
        %401 = vmatprep.subr.mxu0 0.0
        %402 = vmatpush2.msra.mxu0 0.0
        %403 = vmatprep.subr.mxu0 0.0
        %404 = vmatpush2.msra.mxu0 0.0
        %405 = vmatprep.subr.mxu0 0.0
        %406 = vmatpush2.msra.mxu0 0.0
        %407 = vmatprep.mubr.f32.mxu0 0.0
        %408 = vmatmul.mubr.f32.gmra.mxu0 %v326
        %v409 = vpop.f32.mrf.mxu0
        %v410 = vadd.f32 %v297, %v409
        %v411 = vpop.f32.mrf.mxu0
        %412 = vmatprep.mubr.f32.mxu0 0.0
        %413 = vmatmul.mubr.f32.gmra.mxu0 %v329
        %v414 = vpop.f32.mrf.mxu0
        %v415 = vadd.f32 %v302, %v414
        %v416 = vpop.f32.mrf.mxu0
        %417 = vmatprep.mubr.f32.mxu0 0.0
        %418 = vmatmul.mubr.f32.gmra.mxu0 %v332
        %v419 = vpop.f32.mrf.mxu0
        %v420 = vadd.f32 %v307, %v419
        %v421 = vpop.f32.mrf.mxu0
        %422 = vmatprep.mubr.f32.mxu0 0.0
        %423 = vmatmul.mubr.f32.gmra.mxu0 %v335
        %v424 = vpop.f32.mrf.mxu0
        %v425 = vadd.f32 %v312, %v424
        %v426 = vpop.f32.mrf.mxu0
        %427 = vmatprep.mubr.f32.mxu0 0.0
        %428 = vmatmul.mubr.f32.gmra.mxu0 %v338
        %v429 = vpop.f32.mrf.mxu0
        %v430 = vadd.f32 %v317, %v429
        %v431 = vpop.f32.mrf.mxu0
        %432 = vmatprep.mubr.f32.mxu0 0.0
        %433 = vmatmul.mubr.f32.gmra.mxu0 %v341
        %v434 = vpop.f32.mrf.mxu0
        %v435 = vadd.f32 %v322, %v434
        %v436 = vpop.f32.mrf.mxu0
        %437 = vdwg.mxu0
        %v438 = vlaneseq
        %v439 = vshrl.u32 %v438, 7
        %v440 = vsub.s32 1, %v439
        %v441 = vrot.slane %v293, %v440
        %v442 = vmul.f32 %v410, %v441
        %v443 = vmul.f32 %v415, %v441
        %v444 = vlaneseq
        %v445 = vshrl.u32 %v444, 7
        %v446 = vsub.s32 0, %v445
        %v447 = vrot.slane %v293, %v446
        %v448 = vmul.f32 %v420, %v447
        %v449 = vmul.f32 %v425, %v447
        %v450 = vmul.f32 %v430, %v447
        %v451 = vmul.f32 %v435, %v447
        %452 = vmatprep.subr.mxu0 0.0
        %453 = vmatpush1.xpose.msra.mxu0 0.0
        %454 = vmatprep.subr.mxu0 0.0
        %455 = vmatpush1.xpose.msra.mxu0 0.0
        %456 = vmatprep.subr.mxu0 0.0
        %457 = vmatpush1.xpose.msra.mxu0 0.0
        %458 = vmatprep.subr.mxu0 0.0
        %459 = vmatpush1.xpose.msra.mxu0 0.0
        %460 = vmatprep.subr.mxu0 0.0
        %461 = vmatpush1.xpose.msra.mxu0 0.0
        %462 = vmatprep.subr.mxu0 0.0
        %463 = vmatpush1.xpose.msra.mxu0 0.0
        %464 = vmatprep.subr.mxu0 0.0
        %465 = vmatpush1.xpose.msra.mxu0 0.0
        %466 = vmatprep.subr.mxu0 0.0
        %467 = vmatpush1.xpose.msra.mxu0 0.0
        %468 = vmatprep.subr.mxu0 0.0
        %469 = vmatpush1.xpose.msra.mxu0 0.0
        %470 = vmatprep.subr.mxu0 0.0
        %471 = vmatpush1.xpose.msra.mxu0 0.0
        %472 = vmatprep.subr.mxu0 0.0
        %473 = vmatpush1.xpose.msra.mxu0 0.0
        %474 = vmatprep.subr.mxu0 0.0
        %475 = vmatpush1.xpose.msra.mxu0 0.0
        %476 = vmatprep.subr.mxu0 0.0
        %477 = vmatpush1.xpose.msra.mxu0 0.0
        %478 = vmatprep.subr.mxu0 0.0
        %479 = vmatpush1.xpose.msra.mxu0 0.0
        %480 = vmatprep.subr.mxu0 0.0
        %481 = vmatpush1.xpose.msra.mxu0 %v451
        %482 = vmatprep.subr.mxu0 0.0
        %483 = vmatpush1.xpose.msra.mxu0 %v450
        %484 = vmatprep.subr.mxu0 0.0
        %485 = vmatpush2.xpose.msra.mxu0 0.0
        %486 = vmatprep.subr.mxu0 0.0
        %487 = vmatpush2.xpose.msra.mxu0 0.0
        %488 = vmatprep.subr.mxu0 0.0
        %489 = vmatpush2.xpose.msra.mxu0 0.0
        %490 = vmatprep.subr.mxu0 0.0
        %491 = vmatpush2.xpose.msra.mxu0 0.0
        %492 = vmatprep.subr.mxu0 0.0
        %493 = vmatpush2.xpose.msra.mxu0 0.0
        %494 = vmatprep.subr.mxu0 0.0
        %495 = vmatpush2.xpose.msra.mxu0 0.0
        %496 = vmatprep.subr.mxu0 0.0
        %497 = vmatpush2.xpose.msra.mxu0 0.0
        %498 = vmatprep.subr.mxu0 0.0
        %499 = vmatpush2.xpose.msra.mxu0 0.0
        %500 = vmatprep.subr.mxu0 0.0
        %501 = vmatpush2.xpose.msra.mxu0 0.0
        %502 = vmatprep.subr.mxu0 0.0
        %503 = vmatpush2.xpose.msra.mxu0 0.0
        %504 = vmatprep.subr.mxu0 0.0
        %505 = vmatpush2.xpose.msra.mxu0 0.0
        %506 = vmatprep.subr.mxu0 0.0
        %507 = vmatpush2.xpose.msra.mxu0 0.0
        %508 = vmatprep.subr.mxu0 0.0
        %509 = vmatpush2.xpose.msra.mxu0 0.0
        %510 = vmatprep.subr.mxu0 0.0
        %511 = vmatpush2.xpose.msra.mxu0 0.0
        %512 = vmatprep.subr.mxu0 0.0
        %513 = vmatpush2.xpose.msra.mxu0 0.0
        %514 = vmatprep.subr.mxu0 0.0
        %515 = vmatpush2.xpose.msra.mxu0 0.0
        %516 = vmatprep.mubr.f32.mxu0 0.0
        %517 = vmatmul.mubr.f32.gmra.mxu0 %v442
        %v518 = vpop.f32.mrf.mxu0
        %v519 = vadd.f32 0.0, %v518
        %v520 = vpop.f32.mrf.mxu0
        %521 = vmatprep.mubr.f32.mxu0 0.0
        %522 = vmatmul.mubr.f32.gmra.mxu0 %v443
        %v523 = vpop.f32.mrf.mxu0
        %v524 = vadd.f32 0.0, %v523
        %v525 = vpop.f32.mrf.mxu0
        %526 = vdwg.mxu0
        %v527 = vmul.f32 %v519, %v277
        %v528 = vmul.f32 %v524, %v278
        %vm529 = vcmask 130048
        %v531 = vsel %vm529, %v273, 0
        %v534 = vsel %vm529, %v274, 0
        %v537 = vsel %vm529, %v275, 0
        %v540 = vsel %vm529, %v276, 0
        %542 = vmatprep.subr.mxu0 0.0
        %543 = vmatpush1.msra.mxu0 0.0
        %544 = vmatprep.subr.mxu0 0.0
        %545 = vmatpush1.msra.mxu0 0.0
        %546 = vmatprep.subr.mxu0 0.0
        %547 = vmatpush1.msra.mxu0 0.0
        %548 = vmatprep.subr.mxu0 0.0
        %549 = vmatpush1.msra.mxu0 0.0
        %550 = vmatprep.subr.mxu0 0.0
        %551 = vmatpush1.msra.mxu0 0.0
        %552 = vmatprep.subr.mxu0 0.0
        %553 = vmatpush1.msra.mxu0 0.0
        %554 = vmatprep.subr.mxu0 0.0
        %555 = vmatpush1.msra.mxu0 0.0
        %556 = vmatprep.subr.mxu0 0.0
        %557 = vmatpush1.msra.mxu0 0.0
        %558 = vmatprep.subr.mxu0 0.0
        %559 = vmatpush1.msra.mxu0 0.0
        %560 = vmatprep.subr.mxu0 0.0
        %561 = vmatpush1.msra.mxu0 0.0
        %562 = vmatprep.subr.mxu0 0.0
        %563 = vmatpush1.msra.mxu0 0.0
        %564 = vmatprep.subr.mxu0 0.0
        %565 = vmatpush1.msra.mxu0 0.0
        %566 = vmatprep.subr.mxu0 0.0
        %567 = vmatpush1.msra.mxu0 0.0
        %568 = vmatprep.subr.mxu0 0.0
        %569 = vmatpush1.msra.mxu0 0.0
        %570 = vmatprep.subr.mxu0 0.0
        %571 = vmatpush1.msra.mxu0 %v528
        %572 = vmatprep.subr.mxu0 0.0
        %573 = vmatpush1.msra.mxu0 %v527
        %574 = vmatprep.subr.mxu0 0.0
        %575 = vmatpush2.msra.mxu0 0.0
        %576 = vmatprep.subr.mxu0 0.0
        %577 = vmatpush2.msra.mxu0 0.0
        %578 = vmatprep.subr.mxu0 0.0
        %579 = vmatpush2.msra.mxu0 0.0
        %580 = vmatprep.subr.mxu0 0.0
        %581 = vmatpush2.msra.mxu0 0.0
        %582 = vmatprep.subr.mxu0 0.0
        %583 = vmatpush2.msra.mxu0 0.0
        %584 = vmatprep.subr.mxu0 0.0
        %585 = vmatpush2.msra.mxu0 0.0
        %586 = vmatprep.subr.mxu0 0.0
        %587 = vmatpush2.msra.mxu0 0.0
        %588 = vmatprep.subr.mxu0 0.0
        %589 = vmatpush2.msra.mxu0 0.0
        %590 = vmatprep.subr.mxu0 0.0
        %591 = vmatpush2.msra.mxu0 0.0
        %592 = vmatprep.subr.mxu0 0.0
        %593 = vmatpush2.msra.mxu0 0.0
        %594 = vmatprep.subr.mxu0 0.0
        %595 = vmatpush2.msra.mxu0 0.0
        %596 = vmatprep.subr.mxu0 0.0
        %597 = vmatpush2.msra.mxu0 0.0
        %598 = vmatprep.subr.mxu0 0.0
        %599 = vmatpush2.msra.mxu0 0.0
        %600 = vmatprep.subr.mxu0 0.0
        %601 = vmatpush2.msra.mxu0 0.0
        %602 = vmatprep.subr.mxu0 0.0
        %603 = vmatpush2.msra.mxu0 0.0
        %604 = vmatprep.subr.mxu0 0.0
        %605 = vmatpush2.msra.mxu0 0.0
        %606 = vmatprep.mubr.f32.mxu0 0.0
        %607 = vmatmul.mubr.f32.gmra.mxu0 %v531
        %v608 = vpop.f32.mrf.mxu0
        %v609 = vadd.f32 0.0, %v608
        %v610 = vpop.f32.mrf.mxu0
        %611 = vmatprep.mubr.f32.mxu0 0.0
        %612 = vmatmul.mubr.f32.gmra.mxu0 %v534
        %v613 = vpop.f32.mrf.mxu0
        %v614 = vadd.f32 0.0, %v613
        %v615 = vpop.f32.mrf.mxu0
        %616 = vmatprep.mubr.f32.mxu0 0.0
        %617 = vmatmul.mubr.f32.gmra.mxu0 %v537
        %v618 = vpop.f32.mrf.mxu0
        %v619 = vadd.f32 0.0, %v618
        %v620 = vpop.f32.mrf.mxu0
        %621 = vmatprep.mubr.f32.mxu0 0.0
        %622 = vmatmul.mubr.f32.gmra.mxu0 %v540
        %v623 = vpop.f32.mrf.mxu0
        %v624 = vadd.f32 0.0, %v623
        %v625 = vpop.f32.mrf.mxu0
        %626 = vdwg.mxu0
        %628 = vset.pattern.permute.xlu0 0
        %629 = vperm.xlu0 %628, %v285
        %v630 = vpop.permute.xlu0 %629
        %633 = vset.pattern.permute.xlu0 0
        %634 = vperm.xlu0 %633, %v286
        %v635 = vpop.permute.xlu0 %634
        %638 = vset.pattern.permute.xlu0 0
        %639 = vperm.xlu0 %638, %v287
        %v640 = vpop.permute.xlu0 %639
        %643 = vset.pattern.permute.xlu0 0
        %644 = vperm.xlu0 %643, %v288
        %v645 = vpop.permute.xlu0 %644
        %v648 = vsel %vm529, %v609, 0
        %v651 = vsel %vm529, %v614, 0
        %v654 = vsel %vm529, %v619, 0
        %v657 = vsel %vm529, %v624, 0
        %659 = vmatprep.subr.mxu0 0.0
        %660 = vmatpush1.msra.mxu0 0.0
        %661 = vmatprep.subr.mxu0 0.0
        %662 = vmatpush1.msra.mxu0 0.0
        %663 = vmatprep.subr.mxu0 0.0
        %664 = vmatpush1.msra.mxu0 0.0
        %665 = vmatprep.subr.mxu0 0.0
        %666 = vmatpush1.msra.mxu0 0.0
        %667 = vmatprep.subr.mxu0 0.0
        %668 = vmatpush1.msra.mxu0 0.0
        %669 = vmatprep.subr.mxu0 0.0
        %670 = vmatpush1.msra.mxu0 0.0
        %671 = vmatprep.subr.mxu0 0.0
        %672 = vmatpush1.msra.mxu0 0.0
        %673 = vmatprep.subr.mxu0 0.0
        %674 = vmatpush1.msra.mxu0 0.0
        %675 = vmatprep.subr.mxu0 0.0
        %676 = vmatpush1.msra.mxu0 0.0
        %677 = vmatprep.subr.mxu0 0.0
        %678 = vmatpush1.msra.mxu0 0.0
        %679 = vmatprep.subr.mxu0 0.0
        %680 = vmatpush1.msra.mxu0 0.0
        %681 = vmatprep.subr.mxu0 0.0
        %682 = vmatpush1.msra.mxu0 0.0
        %683 = vmatprep.subr.mxu0 0.0
        %684 = vmatpush1.msra.mxu0 0.0
        %685 = vmatprep.subr.mxu0 0.0
        %686 = vmatpush1.msra.mxu0 0.0
        %687 = vmatprep.subr.mxu0 0.0
        %688 = vmatpush1.msra.mxu0 %v449
        %689 = vmatprep.subr.mxu0 0.0
        %690 = vmatpush1.msra.mxu0 %v448
        %691 = vmatprep.subr.mxu0 0.0
        %692 = vmatpush2.msra.mxu0 0.0
        %693 = vmatprep.subr.mxu0 0.0
        %694 = vmatpush2.msra.mxu0 0.0
        %695 = vmatprep.subr.mxu0 0.0
        %696 = vmatpush2.msra.mxu0 0.0
        %697 = vmatprep.subr.mxu0 0.0
        %698 = vmatpush2.msra.mxu0 0.0
        %699 = vmatprep.subr.mxu0 0.0
        %700 = vmatpush2.msra.mxu0 0.0
        %701 = vmatprep.subr.mxu0 0.0
        %702 = vmatpush2.msra.mxu0 0.0
        %703 = vmatprep.subr.mxu0 0.0
        %704 = vmatpush2.msra.mxu0 0.0
        %705 = vmatprep.subr.mxu0 0.0
        %706 = vmatpush2.msra.mxu0 0.0
        %707 = vmatprep.subr.mxu0 0.0
        %708 = vmatpush2.msra.mxu0 0.0
        %709 = vmatprep.subr.mxu0 0.0
        %710 = vmatpush2.msra.mxu0 0.0
        %711 = vmatprep.subr.mxu0 0.0
        %712 = vmatpush2.msra.mxu0 0.0
        %713 = vmatprep.subr.mxu0 0.0
        %714 = vmatpush2.msra.mxu0 0.0
        %715 = vmatprep.subr.mxu0 0.0
        %716 = vmatpush2.msra.mxu0 0.0
        %717 = vmatprep.subr.mxu0 0.0
        %718 = vmatpush2.msra.mxu0 0.0
        %719 = vmatprep.subr.mxu0 0.0
        %720 = vmatpush2.msra.mxu0 0.0
        %721 = vmatprep.subr.mxu0 0.0
        %722 = vmatpush2.msra.mxu0 0.0
        %723 = vmatprep.mubr.f32.mxu0 0.0
        %724 = vmatmul.mubr.f32.gmra.mxu0 %v648
        %v725 = vpop.f32.mrf.mxu0
        %v726 = vadd.f32 %v630, %v725
        %v727 = vpop.f32.mrf.mxu0
        %728 = vmatprep.mubr.f32.mxu0 0.0
        %729 = vmatmul.mubr.f32.gmra.mxu0 %v651
        %v730 = vpop.f32.mrf.mxu0
        %v731 = vadd.f32 %v635, %v730
        %v732 = vpop.f32.mrf.mxu0
        %733 = vmatprep.mubr.f32.mxu0 0.0
        %734 = vmatmul.mubr.f32.gmra.mxu0 %v654
        %v735 = vpop.f32.mrf.mxu0
        %v736 = vadd.f32 %v640, %v735
        %v737 = vpop.f32.mrf.mxu0
        %738 = vmatprep.mubr.f32.mxu0 0.0
        %739 = vmatmul.mubr.f32.gmra.mxu0 %v657
        %v740 = vpop.f32.mrf.mxu0
        %v741 = vadd.f32 %v645, %v740
        %v742 = vpop.f32.mrf.mxu0
        %743 = vdwg.mxu0
        %v744 = vmul.f32 %v726, %v447
        %v745 = vmul.f32 %v731, %v447
        %v746 = vmul.f32 %v736, %v447
        %v747 = vmul.f32 %v741, %v447
        %v748 = vadd.f32 %v744, %v289
        %v749 = vadd.f32 %v745, %v290
        %v750 = vadd.f32 %v746, %v291
        %v751 = vadd.f32 %v747, %v292
        %752 = vst [vmem:[%s257] sm:$0xff] %v748
        %753 = vst [vmem:[%s257 + $0x8] sm:$0xff] %v749
        %754 = vst [vmem:[%s257 + $0x10] sm:$0xff] %v750
        %755 = vst [vmem:[%s257 + $0x18] sm:$0xff] %v751
        %s756 = sand.u32 %s164, 1
        %s757 = scalar_lea.sflag [#allocation3], %s756
        %s758 = sand.u32 %s164, 1
        %s759 = smul.addr %s758, 32
        %s760 = scalar_lea.vmem [#allocation2], %s759
        // Predicated region
        $region45: #{tpu_custom_call.1} parent=43 // pred_check
          %p761 = pneg %p174
        $region46: #{tpu_custom_call.1} parent=43 // pred_check_branch
          %763 = sbr.rel (%p761) target = $region48
        $region47: #{tpu_custom_call.1} parent=43 // pred_region
          %s765 = ssub.s32 512, 512
          %766 = vsyncadd %s757, %s765
          %s767 = smul.addr %s20, 4
          %s768 = smul.addr %s767, 128
          %s769 = scalar_lea.hbm %s6, %s768
          %s770 = sshll.u32 %s760, 4
          %s771 = int_to_ptr.vmem [resolvable:$true] %s770
          %776 = dma.vmem_to_hbm [thread:$0]  %s771, 512, %s769, %s757, 128, 128, 8
        $region48: #{tpu_custom_call.1} parent=43 // pred_fallthru
          _
      $region44: #{tpu_custom_call.1} parent=5 // pred_fallthru
        _
      %p777 = scmp.le.s32.totalorder 2, %s15
      // Predicated region
      $region49: #{tpu_custom_call.1} parent=5 // pred_check
        %p778 = pneg %p777
      $region50: #{tpu_custom_call.1} parent=5 // pred_check_branch
        %780 = sbr.rel (%p778) target = $region52
      $region51: #{tpu_custom_call.1} parent=5 // pred_region
        %s781 = ssub.s32 %s15, 2
        // Predicated region
        $region53: #{tpu_custom_call.1} parent=51 // pred_check
          %p782 = pneg %p180
        $region54: #{tpu_custom_call.1} parent=51 // pred_check_branch
          %784 = sbr.rel (%p782) target = $region56
        $region55: #{tpu_custom_call.1} parent=51 // pred_region
          %s785 = sand.u32 %s165, 1
          %s786 = scalar_lea.sflag [#allocation3], %s785
          %s787 = sand.u32 %s165, 1
          %s788 = smul.addr %s787, 32
          %s789 = scalar_lea.vmem [#allocation2], %s788
          %790 = dma.done %s786, 512
        $region56: #{tpu_custom_call.1} parent=51 // pred_fallthru
          _
      $region52: #{tpu_custom_call.1} parent=5 // pred_fallthru
        _
    $region6: #{tpu_custom_call.1} parent=1 // loop_footer
      %s19 = sadd.s32 1, %s15
    $region7: #{tpu_custom_call.1} parent=1 // loop_footer_branch
      %14 = sbr.rel target = $region3
    $region8: #{tpu_custom_call.1} parent=1 // loop_exit
      _
    %791 = vsyncpa [#allocation3], 1
    %s792 = scalar_lea.sflag [#allocation3], 1
    %793 = vsyncpa %s792, 1

</llo_original>
